<compile_context>
chip_gen: v7x
topology: tpu7x:2x2x1
jax: 0.10.0
libtpu: 0.0.40
codegen_flags: <defaults>
</compile_context>

<pallas_src>
import functools

import jax
import jax.numpy as jnp
import numpy as np
from jax.experimental import pallas as pl
from jax.experimental.pallas import tpu as pltpu


_TILE_BYTES = 2 * 1024 * 1024  # per enc tile buffer (x2 for double buffering)


# ----------------------------- energy kernels --------------------------------


def _dot_energy_kernel(dec_ref, enc_ref, e_ref):
    # e[s, b] = sum_h dec[b, h] * enc[s, b, h]     (one S-tile per grid step)
    dec = dec_ref[...].astype(jnp.float32)                     # (B, H)
    enc = enc_ref[...].astype(jnp.float32)                     # (S_t, B, H)
    e_ref[...] = jnp.sum(enc * dec[None, :, :], axis=2)        # (S_t, B)


def _general_energy_kernel(dec_ref, w_ref, enc_ref, e_ref):
    # general:  energy = enc @ W.T + b ; e = sum_h dec * energy
    # folded :  u = dec @ W  (B, H);  e[s, b] = sum_h enc[s, b, h] * u[b, h]
    # (the dec . bias term is constant over s => softmax(dim=0)-invariant)
    u = jnp.dot(dec_ref[...], w_ref[...],
                preferred_element_type=jnp.float32)            # (B, H) on MXU
    enc = enc_ref[...].astype(jnp.float32)                     # (S_t, B, H)
    e_ref[...] = jnp.sum(enc * u[None, :, :], axis=2)          # (S_t, B)


def _concat_energy_kernel(dec_ref, w1t_ref, w2t_ref, bv_ref, oh_ref,
                          enc_ref, e_ref):
    # concat:  e[s, b] = sum_k v[k] * tanh([dec_b, enc_sb] @ Wc.T + bc)[k]
    # enc rows are pre-flattened to (S*B, H) (s-major, b-minor).  The per-batch
    # dec contribution  pd = dec @ W1.T + bc  is broadcast to every row with a
    # tiny replicated-identity matmul: oh[m, b] = 1 iff row m belongs to batch b,
    # so oh @ pd adds pd[m % B] to row m -- plain 2-D MXU matmuls only.
    pd = jnp.dot(dec_ref[...], w1t_ref[...],
                 preferred_element_type=jnp.float32) + bv_ref[0, :]   # (B, H)
    pre = jnp.dot(enc_ref[...], w2t_ref[...],
                  preferred_element_type=jnp.float32)                 # (M_t, H)
    pre = pre + jnp.dot(oh_ref[...], pd, preferred_element_type=jnp.float32)
    e_ref[...] = jnp.sum(jnp.tanh(pre) * bv_ref[1, :],
                         axis=1, keepdims=True)                       # (M_t, 1)


# ----------------------------- softmax kernel --------------------------------


def _softmax_dim0_kernel(e_ref, out_ref):
    # Numerically stable softmax over axis 0 (the sequence axis, PyTorch dim=0).
    e = e_ref[...]                                             # (S, B)
    m = jnp.max(e, axis=0, keepdims=True)
    p = jnp.exp(e - m)
    denom = jnp.sum(p, axis=0, keepdims=True)
    out_ref[...] = p * pl.reciprocal(denom, approx=False)


# ----------------------------- wrapper helpers --------------------------------


def _const_spec(shape):
    zeros = (0,) * len(shape)
    return pl.BlockSpec(shape, lambda i, _z=zeros: _z)


def _pick_seq_tile(S, row_bytes, *, rows_per_step=1, max_bytes=_TILE_BYTES,
                   cap=1024):
    """Largest divisor t of S with t*row_bytes <= max_bytes and a sublane-aligned
    block ((t*rows_per_step) % 8 == 0); falls back to the full S."""
    limit = min(S, cap, max(1, max_bytes // max(row_bytes, 1)))
    for t in range(limit, 0, -1):
        if S % t == 0 and (t * rows_per_step) % 8 == 0:
            return t
    return S


def _energies_3d(kernel, dec, enc, extras, seq_tile):
    S, B, H = enc.shape
    st = seq_tile or _pick_seq_tile(S, B * H * enc.dtype.itemsize)
    assert S % st == 0 and (st % 8 == 0 or st == S), (S, st)
    in_specs = (
        [_const_spec(dec.shape)]
        + [_const_spec(x.shape) for x in extras]
        + [pl.BlockSpec((st, B, H), lambda i: (i, 0, 0))]   # streamed over S
    )
    return pl.pallas_call(
        kernel,
        out_shape=jax.ShapeDtypeStruct((S, B), jnp.float32),
        grid=(S // st,),
        in_specs=in_specs,
        out_specs=pl.BlockSpec((st, B), lambda i: (i, 0)),
        compiler_params=pltpu.CompilerParams(
            dimension_semantics=("parallel",)),
    )(dec, *extras, enc)


def _energies_concat(dec, enc_flat, w1t, w2t, bv, B, seq_tile):
    M, H = enc_flat.shape
    S = M // B
    st = seq_tile or _pick_seq_tile(S, B * H * enc_flat.dtype.itemsize,
                                    rows_per_step=B)
    assert S % st == 0 and ((st * B) % 8 == 0 or st == S), (S, B, st)
    mt = st * B
    # Row -> batch selector (rows are (s, b) with b minor), built once, resident.
    oh = jnp.tile(jnp.eye(B, dtype=jnp.float32), (st, 1))     # (mt, B)
    in_specs = [
        _const_spec(dec.shape), _const_spec(w1t.shape), _const_spec(w2t.shape),
        _const_spec(bv.shape), _const_spec(oh.shape),
        pl.BlockSpec((mt, H), lambda i: (i, 0)),              # streamed rows
    ]
    e_flat = pl.pallas_call(
        _concat_energy_kernel,
        out_shape=jax.ShapeDtypeStruct((M, 1), jnp.float32),
        grid=(S // st,),
        in_specs=in_specs,
        out_specs=pl.BlockSpec((mt, 1), lambda i: (i, 0)),
        compiler_params=pltpu.CompilerParams(
            dimension_semantics=("parallel",)),
    )(dec, w1t, w2t, bv, oh, enc_flat)
    return e_flat.reshape(S, B)                               # free metadata reshape


def _softmax_dim0(e):
    S, B = e.shape
    return pl.pallas_call(
        _softmax_dim0_kernel,
        out_shape=jax.ShapeDtypeStruct((S, B), jnp.float32),
        grid=(1,),
        in_specs=[pl.BlockSpec((S, B), lambda i: (0, 0))],
        out_specs=pl.BlockSpec((S, B), lambda i: (0, 0)),
        compiler_params=pltpu.CompilerParams(
            dimension_semantics=("arbitrary",)),
    )(e)


# ----------------------------- public forward --------------------------------


@functools.partial(jax.jit, static_argnames=("method", "seq_tile"))
def attention_forward(dec_out, enc_outs, params, *, method, seq_tile=None):
    """dec_out: (1, B, H), enc_outs: (S, B, H) -> softmax energies (S, B)
    (softmax over the seq axis, i.e. PyTorch F.softmax(..., dim=0))."""
    S, B, H = enc_outs.shape
    dec = dec_out.reshape(B, H)      # free: (1, B, H) -> (B, H)
    enc = enc_outs                   # keep native (S, B, H) layout; no transpose

    if method == "dot":
        e = _energies_3d(_dot_energy_kernel, dec, enc, (), seq_tile)
    elif method == "general":
        w = params["w_g"]            # nn.Linear weight (out=H, in=H); used as dec @ W
        e = _energies_3d(_general_energy_kernel, dec, enc, (w,), seq_tile)
    elif method == "concat":
        wc = params["w_c"]           # (H, 2H): [:, :H] acts on dec, [:, H:] on enc
        w1t = wc[:, :H].T            # (H_in, H_out) so kernels do x @ w directly
        w2t = wc[:, H:].T
        bv = jnp.stack([params["b_c"], params["v"]]).astype(jnp.float32)  # (2, H)
        enc_flat = enc.reshape(S * B, H)   # free row-major collapse; b is minor
        e = _energies_concat(dec, enc_flat, w1t, w2t, bv, B, seq_tile)
    else:
        raise ValueError(method)

    return _softmax_dim0(e)


# ----------------------------- pure-JAX reference -----------------------------


def attention_ref(dec_out, enc_outs, params, method):
    if method == "dot":
        e = jnp.sum(dec_out * enc_outs, axis=2)
    elif method == "general":
        energy = enc_outs @ params["w_g"].T + params["b_g"]
        e = jnp.sum(dec_out * energy, axis=2)
    else:  # concat
        dec = jnp.broadcast_to(dec_out, enc_outs.shape)
        cat = jnp.concatenate([dec, enc_outs], axis=2)
        energy = jnp.tanh(cat @ params["w_c"].T + params["b_c"])
        e = jnp.sum(params["v"] * energy, axis=2)
    return jax.nn.softmax(e, axis=0)


# ----------------------------- main -------------------------------------------


if __name__ == "__main__":
    configs = [
        dict(S=16, B=4, H=32, seq_tile=8),     # multi-tile grid (2 seq tiles)
        dict(S=24, B=8, H=64, seq_tile=None),  # auto tile selection
    ]

    key = jax.random.PRNGKey(0)
    for cfg in configs:
        S, B, H = cfg["S"], cfg["B"], cfg["H"]
        key, *ks = jax.random.split(key, 8)
        dec_out = jax.random.normal(ks[0], (1, B, H), dtype=jnp.float32)
        enc_outs = jax.random.normal(ks[1], (S, B, H), dtype=jnp.float32)
        params = {
            "w_g": 0.1 * jax.random.normal(ks[2], (H, H), dtype=jnp.float32),
            "b_g": 0.1 * jax.random.normal(ks[3], (H,), dtype=jnp.float32),
            "w_c": 0.1 * jax.random.normal(ks[4], (H, 2 * H), dtype=jnp.float32),
            "b_c": 0.1 * jax.random.normal(ks[5], (H,), dtype=jnp.float32),
            "v": 0.1 * jax.random.normal(ks[6], (H,), dtype=jnp.float32),
        }

        for method in ("dot", "general", "concat"):
            out = attention_forward(dec_out, enc_outs, params,
                                    method=method, seq_tile=cfg["seq_tile"])
            out = jax.block_until_ready(out)
            ref = attention_ref(dec_out, enc_outs, params, method)
            np.testing.assert_allclose(np.asarray(out), np.asarray(ref),
                                       rtol=1e-5, atol=1e-5)
            assert out.shape == (S, B)

    print("KERNEL_OK")
</pallas_src>

<mosaic_0001>
module attributes {stable_mosaic.version = 11 : i64} {
  func.func @_softmax_dim0_kernel(%arg0: i32, %arg1: memref<16x4xf32, #tpu.memory_space<vmem>>, %arg2: memref<16x4xf32, #tpu.memory_space<vmem>>) attributes {dimension_semantics = [#tpu.dimension_semantics<arbitrary>], iteration_bounds = array<i64: 1>, scalar_prefetch = 0 : i64, scratch_operands = 0 : i64, tpu.core_type = #tpu.core_type<tc>, window_params = [{pipeline_mode = #tpu.pipeline_mode<synchronous>, transform_indices = @transform_0, window_bounds = array<i64: 16, 4>}, {pipeline_mode = #tpu.pipeline_mode<synchronous>, transform_indices = @transform_1, window_bounds = array<i64: 16, 4>}]} {
    %c0 = arith.constant 0 : index
    %c0_0 = arith.constant 0 : index
    %0 = vector.load %arg1[%c0, %c0_0] : memref<16x4xf32, #tpu.memory_space<vmem>>, vector<16x4xf32>
    %cst = arith.constant dense<0xFF800000> : vector<4xf32>
    %1 = vector.multi_reduction <maximumf>, %0, %cst [0] : vector<16x4xf32> to vector<4xf32>
    %2 = vector.shape_cast %1 : vector<4xf32> to vector<1x4xf32>
    %3 = vector.broadcast %2 : vector<1x4xf32> to vector<16x4xf32>
    %4 = arith.subf %0, %3 : vector<16x4xf32>
    %5 = math.exp %4 : vector<16x4xf32>
    %cst_1 = arith.constant dense<0.000000e+00> : vector<4xf32>
    %6 = vector.multi_reduction <add>, %5, %cst_1 [0] : vector<16x4xf32> to vector<4xf32>
    %7 = vector.shape_cast %6 : vector<4xf32> to vector<1x4xf32>
    %8 = tpu.reciprocal %7 : vector<1x4xf32> -> vector<1x4xf32>
    %9 = vector.broadcast %8 : vector<1x4xf32> to vector<16x4xf32>
    %10 = arith.mulf %5, %9 : vector<16x4xf32>
    %c0_2 = arith.constant 0 : index
    %c0_3 = arith.constant 0 : index
    %11 = vector.load %arg2[%c0_2, %c0_3] : memref<16x4xf32, #tpu.memory_space<vmem>>, vector<16x4xf32>
    tpu.vector_store %arg2[%c0_2, %c0_3], %10 {strides = array<i32>} : memref<16x4xf32, #tpu.memory_space<vmem>>, vector<16x4xf32>,
    return
  }
  func.func @transform_0(%arg0: i32) -> (i32, i32) {
    %c0_i32 = arith.constant 0 : i32
    %c0_i32_0 = arith.constant 0 : i32
    %c0_i32_1 = arith.constant 0 : i32
    return %c0_i32, %c0_i32_0 : i32, i32
  }
  func.func @transform_1(%arg0: i32) -> (i32, i32) {
    %c0_i32 = arith.constant 0 : i32
    %c0_i32_0 = arith.constant 0 : i32
    %c0_i32_1 = arith.constant 0 : i32
    return %c0_i32, %c0_i32_0 : i32, i32
  }
}

module attributes {stable_mosaic.version = 11 : i64} {
  func.func @_dot_energy_kernel(%arg0: i32, %arg1: memref<4x32xf32, #tpu.memory_space<vmem>>, %arg2: memref<8x4x32xf32, #tpu.memory_space<vmem>>, %arg3: memref<8x4xf32, #tpu.memory_space<vmem>>) attributes {dimension_semantics = [#tpu.dimension_semantics<parallel>], iteration_bounds = array<i64: 2>, scalar_prefetch = 0 : i64, scratch_operands = 0 : i64, tpu.core_type = #tpu.core_type<tc>, window_params = [{pipeline_mode = #tpu.pipeline_mode<synchronous>, transform_indices = @transform_0, window_bounds = array<i64: 4, 32>}, {transform_indices = @transform_1, window_bounds = array<i64: 8, 4, 32>}, {transform_indices = @transform_2, window_bounds = array<i64: 8, 4>}]} {
    %c0 = arith.constant 0 : index
    %c0_0 = arith.constant 0 : index
    %0 = vector.load %arg1[%c0, %c0_0] : memref<4x32xf32, #tpu.memory_space<vmem>>, vector<4x32xf32>
    %c0_1 = arith.constant 0 : index
    %c0_2 = arith.constant 0 : index
    %c0_3 = arith.constant 0 : index
    %1 = vector.load %arg2[%c0_1, %c0_2, %c0_3] : memref<8x4x32xf32, #tpu.memory_space<vmem>>, vector<8x4x32xf32>
    %2 = vector.shape_cast %0 : vector<4x32xf32> to vector<1x4x32xf32>
    %3 = vector.broadcast %2 : vector<1x4x32xf32> to vector<8x4x32xf32>
    %4 = arith.mulf %1, %3 : vector<8x4x32xf32>
    %cst = arith.constant dense<0.000000e+00> : vector<8x4xf32>
    %5 = vector.multi_reduction <add>, %4, %cst [2] : vector<8x4x32xf32> to vector<8x4xf32>
    %c0_4 = arith.constant 0 : index
    %c0_5 = arith.constant 0 : index
    %6 = vector.load %arg3[%c0_4, %c0_5] : memref<8x4xf32, #tpu.memory_space<vmem>>, vector<8x4xf32>
    tpu.vector_store %arg3[%c0_4, %c0_5], %5 {strides = array<i32>} : memref<8x4xf32, #tpu.memory_space<vmem>>, vector<8x4xf32>,
    return
  }
  func.func @transform_0(%arg0: i32) -> (i32, i32) {
    %c0_i32 = arith.constant 0 : i32
    %c0_i32_0 = arith.constant 0 : i32
    %c0_i32_1 = arith.constant 0 : i32
    return %c0_i32, %c0_i32_0 : i32, i32
  }
  func.func @transform_1(%arg0: i32) -> (i32, i32, i32) {
    %c0_i32 = arith.constant 0 : i32
    %c0_i32_0 = arith.constant 0 : i32
    %c0_i32_1 = arith.constant 0 : i32
    return %arg0, %c0_i32, %c0_i32_0 : i32, i32, i32
  }
  func.func @transform_2(%arg0: i32) -> (i32, i32) {
    %c0_i32 = arith.constant 0 : i32
    %c0_i32_0 = arith.constant 0 : i32
    return %arg0, %c0_i32 : i32, i32
  }
}

</mosaic_0001>

<llo_original>
// kernel: attention_forward.3
$region0: #{attention_forward.3}
  #allocation0 [shape = 'u32[]', space=smem, size = 0x4, offset = 0x4, fixed_abs, tag = 'smem constant byte address 0x4 - core index']
  #allocation1 [shape = 'u32[144,128]{1,0:T(1,128)}', space=vmem, size = 0x12000, scoped, tag = 'internal scratch']
  %s0 = inlined_call_operand.vmem [shape: f32[16,4], index: 0, kind: input, shape index: {}]
  %s1 = inlined_call_operand.vmem [shape: f32[16,4], index: 1, kind: output, shape index: {}]
  %s2 = sld [smem:[#allocation0]]
  $region14: #{attention_forward.3} parent=0
    _
  %s4 = ssub.s32 1, %s2
  %s5 = scalar_select 0, %s4, %s2
  // Predicated region
  $region2: #{attention_forward.3} parent=0 // pred_check
    _
  $region3: #{attention_forward.3} parent=0 // pred_check_branch
    %7 = sbr.rel (0) target = $region5
  $region4: #{attention_forward.3} parent=0 // pred_region
    _
  $region5: #{attention_forward.3} parent=0 // pred_fallthru
    _
  %v8 = vld [vmem:[%s0] sm:$0xff]
  %v9 = vld [vmem:[%s0 + $0x8] sm:$0xff]
  %vm10 = vcmask 31744
  %v11 = vsel %vm10, %v8, -inf
  %v12 = vsel %vm10, %v9, -inf
  %v13 = vmax.f32 %v11, %v12
  %v14 = vrot.slane %v13, 4
  %v15 = vmax.f32 %v13, %v14
  %v16 = vrot.slane %v15, 2
  %v17 = vmax.f32 %v15, %v16
  %v18 = vrot.slane %v17, 1
  %v19 = vmax.f32 %v17, %v18
  %v20 = vsub.f32 %v8, %v19
  %v21 = vsub.f32 %v9, %v19
  %v22 = vmul.f32 %v20, 1.442695
  %v23 = vpow.pop %v22
  %v24 = vmul.f32 %v21, 1.442695
  %v25 = vpow.pop %v24
  %v26 = vsel %vm10, %v23, 0.0
  %v27 = vsel %vm10, %v25, 0.0
  %v28 = vadd.f32 %v26, %v27
  %v29 = vrot.slane %v28, 4
  %v30 = vadd.f32 %v28, %v29
  %v31 = vrot.slane %v30, 2
  %v32 = vadd.f32 %v30, %v31
  %v33 = vrot.slane %v32, 1
  %v34 = vadd.f32 %v32, %v33
  %v35 = vrcp.pop %v34
  %v36 = vmul.f32 %v23, %v35
  %v37 = vmul.f32 %v25, %v35
  %38 = vst.msk [vmem:[%s1] sm:$0xff] %vm10, %v36
  %39 = vst.msk [vmem:[%s1 + $0x8] sm:$0xff] %vm10, %v37
  // Predicated region
  $region6: #{attention_forward.3} parent=0 // pred_check
    _
  $region7: #{attention_forward.3} parent=0 // pred_check_branch
    %41 = sbr.rel (0) target = $region9
  $region8: #{attention_forward.3} parent=0 // pred_region
    _
  $region9: #{attention_forward.3} parent=0 // pred_fallthru
    _
  // Predicated region
  $region10: #{attention_forward.3} parent=0 // pred_check
    _
  $region11: #{attention_forward.3} parent=0 // pred_check_branch
    %43 = sbr.rel (0) target = $region13
  $region12: #{attention_forward.3} parent=0 // pred_region
    _
  $region13: #{attention_forward.3} parent=0 // pred_fallthru
    _

// kernel: attention_forward.2
$region0: #{attention_forward.2}
  #allocation0 [shape = 'u32[]', space=smem, size = 0x4, offset = 0x4, fixed_abs, tag = 'smem constant byte address 0x4 - core index']
  #allocation1 [shape = 'u32[144,128]{1,0:T(1,128)}', space=vmem, size = 0x12000, scoped, tag = 'internal scratch']
  %s0 = inlined_call_operand.hbm [shape: f32[4,32], index: 0, kind: input, shape index: {}]
  %s1 = inlined_call_operand.hbm [shape: f32[16,4,32], index: 1, kind: input, shape index: {}]
  %s2 = inlined_call_operand.vmem [shape: f32[16,4], index: 2, kind: output, shape index: {}]
  %s3 = sld [smem:[#allocation0]]
  $region49: #{attention_forward.2} parent=0
    _
  %s5 = ssub.s32 1, %s3
  %s6 = scalar_select 0, %s5, %s3
  $region1: #{attention_forward.2} parent=0
    #allocation2 [shape = 'u8[2048]{0}', space=vmem, size = 0x800, scoped, tag = 'input window, operand 0, single buffered']
    #allocation3 [shape = 's32[2]{0}', space=sflag, size = 0x8, scoped, tag = 'scoped memory for attention_forward.2']
    #allocation4 [shape = 'u8[32768]{0}', space=vmem, size = 0x8000, scoped, tag = 'input window, operand 1']
    #allocation5 [shape = 's32[2]{0}', space=sflag, size = 0x8, scoped, tag = 'scoped memory for attention_forward.2']
    %7 = vsyncpa [#allocation3], 0
    %8 = vsyncpa [#allocation5], 0
    %s9 = scalar_lea.sflag [#allocation5], 1
    %10 = vsyncpa %s9, 0
    loop: start=0, step=1, limit=4
    $region2: #{attention_forward.2} parent=1 // loop_pre_header
      _
    $region3: #{attention_forward.2} parent=1 // loop_header
      %s12 = sphi 0, %s16
      %p13 = scmp.ge.s32.totalorder %s12, 4
      %s20 = sphi 0, %s20
      %s22 = sphi 0, %s20
      %s23 = sphi 0, %s22
      %s37 = sphi 0, %s23
      %s43 = sphi 0, %s45
      %s46 = sphi 0, %s43
      %s47 = sphi 0, %s46
      %s63 = sphi 0, %s47
      %s69 = sphi 0, %s71
      %s72 = sphi 0, %s69
      %s73 = sphi 0, %s72
      %s89 = sphi 0, %s73
    $region4: #{attention_forward.2} parent=1 // loop_header_branch
      %15 = sbr.rel (%p13) target = $region8
    $region5: #{attention_forward.2} parent=1 // loop_body
      %s17 = ssub.s32 %s12, 1
      %s18 = ssub.s32 %s12, 2
      %s19 = sadd.s32 %s12, 1
      %s21 = sadd.s32 %s20, 1
      %p24 = scmp.eq.s32.totalorder %s12, 1
      %p25 = scmp.ne.s32.totalorder %s20, %s22
      %p26 = scmp.eq.s32.totalorder %s12, 0
      %p27 = por %p25, %p26
      %p28 = scmp.ne.s32.totalorder %s20, %s22
      %p29 = scmp.eq.s32.totalorder %s17, 1
      %p30 = por %p28, %p29
      %p31 = scmp.ne.s32.totalorder %s22, %s23
      %p32 = scmp.eq.s32.totalorder %s17, 0
      %p33 = por %p31, %p32
      %p34 = scmp.ne.s32.totalorder %s22, %s23
      %p35 = scmp.eq.s32.totalorder %s18, 1
      %p36 = por %p34, %p35
      %p38 = scmp.ne.s32.totalorder %s23, %s37
      %p39 = scmp.eq.s32.totalorder %s18, 0
      %p40 = por %p38, %p39
      %s41 = ssub.s32 %s12, %s19
      %p42 = scmp.eq.s32.totalorder %s41, 0
      %s44 = sadd.s32 %s43, 1
      %s45 = scalar_select %p42, %s43, %s44
      %p48 = pneg %p42
      %p49 = scmp.eq.s32.totalorder %s12, 1
      %p50 = por %p48, %p49
      %p51 = scmp.ne.s32.totalorder %s43, %s46
      %p52 = scmp.eq.s32.totalorder %s12, 0
      %p53 = por %p51, %p52
      %p54 = scmp.ne.s32.totalorder %s43, %s46
      %p55 = scmp.eq.s32.totalorder %s17, 1
      %p56 = por %p54, %p55
      %p57 = scmp.ne.s32.totalorder %s46, %s47
      %p58 = scmp.eq.s32.totalorder %s17, 0
      %p59 = por %p57, %p58
      %p60 = scmp.ne.s32.totalorder %s46, %s47
      %p61 = scmp.eq.s32.totalorder %s18, 1
      %p62 = por %p60, %p61
      %p64 = scmp.ne.s32.totalorder %s47, %s63
      %p65 = scmp.eq.s32.totalorder %s18, 0
      %p66 = por %p64, %p65
      %s67 = ssub.s32 %s12, %s19
      %p68 = scmp.eq.s32.totalorder %s67, 0
      %s70 = sadd.s32 %s69, 1
      %s71 = scalar_select %p68, %s69, %s70
      %p74 = pneg %p68
      %p75 = scmp.eq.s32.totalorder %s12, 1
      %p76 = por %p74, %p75
      %p77 = scmp.ne.s32.totalorder %s69, %s72
      %p78 = scmp.eq.s32.totalorder %s12, 0
      %p79 = por %p77, %p78
      %p80 = scmp.ne.s32.totalorder %s69, %s72
      %p81 = scmp.eq.s32.totalorder %s17, 1
      %p82 = por %p80, %p81
      %p83 = scmp.ne.s32.totalorder %s72, %s73
      %p84 = scmp.eq.s32.totalorder %s17, 0
      %p85 = por %p83, %p84
      %p86 = scmp.ne.s32.totalorder %s72, %s73
      %p87 = scmp.eq.s32.totalorder %s18, 1
      %p88 = por %p86, %p87
      %p90 = scmp.ne.s32.totalorder %s73, %s89
      %p91 = scmp.eq.s32.totalorder %s18, 0
      %p92 = por %p90, %p91
      %p93 = scmp.le.s32.totalorder 1, %s12
      %p94 = scmp.lt.s32.totalorder %s12, 3
      %p95 = pnand %p93, %p94
      %p96 = pneg %p95
      // Predicated region
      $region9: #{attention_forward.2} parent=5 // pred_check
        _
      $region10: #{attention_forward.2} parent=5 // pred_check_branch
        %98 = sbr.rel (%p95) target = $region12
      $region11: #{attention_forward.2} parent=5 // pred_region
        %s99 = ssub.s32 %s12, 1
        // Predicated region
        $region13: #{attention_forward.2} parent=11 // pred_check
          %p100 = pneg %p33
        $region14: #{attention_forward.2} parent=11 // pred_check_branch
          %102 = sbr.rel (%p100) target = $region16
        $region15: #{attention_forward.2} parent=11 // pred_region
          %s104 = ssub.s32 64, 64
          %105 = vsyncadd [#allocation3], %s104
          %s107 = sshll.u32 [#allocation2], 4
          %s108 = int_to_ptr.vmem [resolvable:$true] %s107
          %110 = dma.hbm_to_vmem [thread:$0]  %s0, 64, %s108, [#allocation3]
        $region16: #{attention_forward.2} parent=11 // pred_fallthru
          _
      $region12: #{attention_forward.2} parent=5 // pred_fallthru
        _
      %p111 = scmp.lt.s32.totalorder %s12, 2
      // Predicated region
      $region17: #{attention_forward.2} parent=5 // pred_check
        %p112 = pneg %p111
      $region18: #{attention_forward.2} parent=5 // pred_check_branch
        %114 = sbr.rel (%p112) target = $region20
      $region19: #{attention_forward.2} parent=5 // pred_region
        // Predicated region
        $region21: #{attention_forward.2} parent=19 // pred_check
          %p115 = pneg %p53
        $region22: #{attention_forward.2} parent=19 // pred_check_branch
          %117 = sbr.rel (%p115) target = $region24
        $region23: #{attention_forward.2} parent=19 // pred_region
          %s118 = sand.u32 %s43, 1
          %s119 = scalar_lea.sflag [#allocation5], %s118
          %s120 = sand.u32 %s43, 1
          %s121 = smul.addr %s120, 32
          %s122 = scalar_lea.vmem [#allocation4], %s121
          %s123 = smul.u32 8, %s12
          %s125 = ssub.s32 512, 512
          %126 = vsyncadd %s119, %s125
          %s127 = smul.addr %s123, 64
          %s128 = scalar_lea.hbm %s1, %s127
          %s129 = sshll.u32 %s122, 4
          %s130 = int_to_ptr.vmem [resolvable:$true] %s129
          %135 = dma.hbm_to_vmem [thread:$0]  %s128, 512, %s130, %s119, 64, 64, 4
        $region24: #{attention_forward.2} parent=19 // pred_fallthru
          _
      $region20: #{attention_forward.2} parent=5 // pred_fallthru
        _
      %p136 = scmp.le.s32.totalorder 1, %s12
      %p137 = scmp.lt.s32.totalorder %s12, 3
      %p138 = pnand %p136, %p137
      %p139 = pneg %p138
      // Predicated region
      $region25: #{attention_forward.2} parent=5 // pred_check
        _
      $region26: #{attention_forward.2} parent=5 // pred_check_branch
        %141 = sbr.rel (%p138) target = $region28
      $region27: #{attention_forward.2} parent=5 // pred_region
        %s142 = ssub.s32 %s12, 1
        // Predicated region
        $region29: #{attention_forward.2} parent=27 // pred_check
          %p143 = pneg %p33
        $region30: #{attention_forward.2} parent=27 // pred_check_branch
          %145 = sbr.rel (%p143) target = $region32
        $region31: #{attention_forward.2} parent=27 // pred_region
          %146 = dma.done [#allocation3], 64
        $region32: #{attention_forward.2} parent=27 // pred_fallthru
          _
        %s147 = sand.u32 %s46, 1
        %s148 = scalar_lea.sflag [#allocation5], %s147
        %s149 = sand.u32 %s46, 1
        %s150 = smul.addr %s149, 32
        %s151 = scalar_lea.vmem [#allocation4], %s150
        // Predicated region
        $region33: #{attention_forward.2} parent=27 // pred_check
          %p152 = pneg %p59
        $region34: #{attention_forward.2} parent=27 // pred_check_branch
          %154 = sbr.rel (%p152) target = $region36
        $region35: #{attention_forward.2} parent=27 // pred_region
          %155 = dma.done %s148, 512
        $region36: #{attention_forward.2} parent=27 // pred_fallthru
          _
        %p156 = pneg %p33
        %p157 = pneg %p30
        %s158 = sand.u32 %s46, 1
        %s159 = scalar_lea.sflag [#allocation5], %s158
        %s160 = sand.u32 %s46, 1
        %s161 = smul.addr %s160, 32
        %s162 = scalar_lea.vmem [#allocation4], %s161
        %p163 = pneg %p59
        %p164 = pneg %p56
        %p165 = pneg %p85
        %p166 = pneg %p82
        %p167 = scmp.lt.s32.totalorder %s17, 1
        %s168 = scalar_select %p167, %s17, 1
        %s169 = smul.addr %s168, 8
        %s170 = scalar_lea.vmem %s2, %s169
        %s171 = smul.u32 8, %s17
        %p172 = scmp.lt.s32.totalorder %s17, 1
        %s173 = scalar_select %p172, %s17, 1
        %s174 = smul.addr %s173, 8
        %s175 = scalar_lea.vmem %s2, %s174
        %v176 = vld [vmem:[#allocation2] sm:$0xf]
        %v177 = vld [vmem:[%s151] sm:$0xf]
        %v178 = vld [vmem:[%s151 + $0x4] sm:$0xf]
        %v179 = vld [vmem:[%s151 + $0x8] sm:$0xf]
        %v180 = vld [vmem:[%s151 + $0xc] sm:$0xf]
        %v181 = vld [vmem:[%s151 + $0x10] sm:$0xf]
        %v182 = vld [vmem:[%s151 + $0x14] sm:$0xf]
        %v183 = vld [vmem:[%s151 + $0x18] sm:$0xf]
        %v184 = vld [vmem:[%s151 + $0x1c] sm:$0xf]
        %v185 = vmul.f32 %v177, %v176
        %v186 = vmul.f32 %v178, %v176
        %v187 = vmul.f32 %v179, %v176
        %v188 = vmul.f32 %v180, %v176
        %v189 = vmul.f32 %v181, %v176
        %v190 = vmul.f32 %v182, %v176
        %v191 = vmul.f32 %v183, %v176
        %v192 = vmul.f32 %v184, %v176
        %vm193 = vcmask 257024
        %v194 = vsel %vm193, %v185, 0.0
        %195 = vadd.xlane.f32.xlu0 %v194
        %v196 = vpop.xlane.xlu0 %195
        %v197 = vsel %vm193, %v186, 0.0
        %198 = vadd.xlane.f32.xlu0 %v197
        %v199 = vpop.xlane.xlu0 %198
        %v200 = vsel %vm193, %v187, 0.0
        %201 = vadd.xlane.f32.xlu0 %v200
        %v202 = vpop.xlane.xlu0 %201
        %v203 = vsel %vm193, %v188, 0.0
        %204 = vadd.xlane.f32.xlu0 %v203
        %v205 = vpop.xlane.xlu0 %204
        %v206 = vsel %vm193, %v189, 0.0
        %207 = vadd.xlane.f32.xlu0 %v206
        %v208 = vpop.xlane.xlu0 %207
        %v209 = vsel %vm193, %v190, 0.0
        %210 = vadd.xlane.f32.xlu0 %v209
        %v211 = vpop.xlane.xlu0 %210
        %v212 = vsel %vm193, %v191, 0.0
        %213 = vadd.xlane.f32.xlu0 %v212
        %v214 = vpop.xlane.xlu0 %213
        %v215 = vsel %vm193, %v192, 0.0
        %216 = vadd.xlane.f32.xlu0 %v215
        %v217 = vpop.xlane.xlu0 %216
        %v226 = vlaneseq
        %v227 = vand.u32 %v226, 127
        %v228 = vlaneseq
        %v229 = vshrl.u32 %v228, 7
        %v230 = vsub.s32 %v227, %v229
        %v231 = vrot.slane %v196, %v230
        %v232 = vlaneseq
        %v233 = vshrl.u32 %v232, 7
        %v234 = vsub.s32 %v227, %v233
        %v235 = vrot.slane %v199, %v234
        %v236 = vlaneseq
        %v237 = vshrl.u32 %v236, 7
        %v238 = vsub.s32 %v227, %v237
        %v239 = vrot.slane %v202, %v238
        %v240 = vlaneseq
        %v241 = vshrl.u32 %v240, 7
        %v242 = vsub.s32 %v227, %v241
        %v243 = vrot.slane %v205, %v242
        %v244 = vlaneseq
        %v245 = vshrl.u32 %v244, 7
        %v246 = vsub.s32 %v227, %v245
        %v247 = vrot.slane %v208, %v246
        %v248 = vlaneseq
        %v249 = vshrl.u32 %v248, 7
        %v250 = vsub.s32 %v227, %v249
        %v251 = vrot.slane %v211, %v250
        %v252 = vlaneseq
        %v253 = vshrl.u32 %v252, 7
        %v254 = vsub.s32 %v227, %v253
        %v255 = vrot.slane %v214, %v254
        %v256 = vlaneseq
        %v257 = vshrl.u32 %v256, 7
        %v258 = vsub.s32 %v227, %v257
        %v259 = vrot.slane %v217, %v258
        %vm260 = vcmask 1041409
        %v261 = vsel %vm260, %v235, %v231
        %vm262 = vcmask 1042434
        %v263 = vsel %vm262, %v239, %v261
        %vm264 = vcmask 1043459
        %v265 = vsel %vm264, %v243, %v263
        %vm266 = vcmask 1044484
        %v267 = vsel %vm266, %v247, %v265
        %vm268 = vcmask 1045509
        %v269 = vsel %vm268, %v251, %v267
        %vm270 = vcmask 1046534
        %v271 = vsel %vm270, %v255, %v269
        %vm272 = vcmask 1047559
        %v273 = vsel %vm272, %v259, %v271
        %vm275 = vcmask 31744
        %276 = vst.msk [vmem:[%s175] sm:$0xff] %vm275, %v273
        %p277 = scmp.lt.s32.totalorder %s17, 1
        %s278 = scalar_select %p277, %s17, 1
        %s279 = smul.addr %s278, 8
        %s280 = scalar_lea.vmem %s2, %s279
        // Predicated region
        $region37: #{attention_forward.2} parent=27 // pred_check
          %p281 = pneg %p82
        $region38: #{attention_forward.2} parent=27 // pred_check_branch
          %283 = sbr.rel (%p281) target = $region40
        $region39: #{attention_forward.2} parent=27 // pred_region
          _
        $region40: #{attention_forward.2} parent=27 // pred_fallthru
          _
      $region28: #{attention_forward.2} parent=5 // pred_fallthru
        _
      %p284 = scmp.le.s32.totalorder 2, %s12
      // Predicated region
      $region41: #{attention_forward.2} parent=5 // pred_check
        %p285 = pneg %p284
      $region42: #{attention_forward.2} parent=5 // pred_check_branch
        %287 = sbr.rel (%p285) target = $region44
      $region43: #{attention_forward.2} parent=5 // pred_region
        %s288 = ssub.s32 %s12, 2
        // Predicated region
        $region45: #{attention_forward.2} parent=43 // pred_check
          %p289 = pneg %p88
        $region46: #{attention_forward.2} parent=43 // pred_check_branch
          %291 = sbr.rel (%p289) target = $region48
        $region47: #{attention_forward.2} parent=43 // pred_region
          %p292 = scmp.lt.s32.totalorder %s18, 1
          %s293 = scalar_select %p292, %s18, 1
          %s294 = smul.addr %s293, 8
          %s295 = scalar_lea.vmem %s2, %s294
        $region48: #{attention_forward.2} parent=43 // pred_fallthru
          _
      $region44: #{attention_forward.2} parent=5 // pred_fallthru
        _
    $region6: #{attention_forward.2} parent=1 // loop_footer
      %s16 = sadd.s32 1, %s12
    $region7: #{attention_forward.2} parent=1 // loop_footer_branch
      %11 = sbr.rel target = $region3
    $region8: #{attention_forward.2} parent=1 // loop_exit
      _
    %296 = vsyncpa [#allocation3], 1
    %s297 = scalar_lea.sflag [#allocation3], 1
    %298 = vsyncpa %s297, 1
    %299 = vsyncpa [#allocation5], 1
    %s300 = scalar_lea.sflag [#allocation5], 1
    %301 = vsyncpa %s300, 1

</llo_original>
